<compile_context>
chip_gen: v7x
topology: tpu7x:2x2x1
jax: 0.10.0
libtpu: 0.0.40
codegen_flags: <defaults>
</compile_context>

<pallas_src>
import jax
import jax.numpy as jnp
from jax.experimental import pallas as pl
from jax.experimental.pallas import tpu as pltpu

PAD = 6  # total apron: three cascaded 5x5 stride-1 pools, pad 2 each


def _pool5_valid(a):
    """5x5 stride-1 'valid' max pool: (Cb, Ha, Wa) -> (Cb, Ha-4, Wa-4).

    Separable (W then H) with log-depth doubling (3 maxes per axis).
    """
    _, Ha, Wa = a.shape
    # along W (lane axis)
    t = jnp.maximum(a[:, :, :Wa - 1], a[:, :, 1:])   # window 2
    t = jnp.maximum(t[:, :, :Wa - 3], t[:, :, 2:])   # window 4
    r = jnp.maximum(t[:, :, :Wa - 4], a[:, :, 4:])   # window 5
    # along H (sublane axis)
    s = jnp.maximum(r[:, :Ha - 1, :], r[:, 1:, :])
    s = jnp.maximum(s[:, :Ha - 3, :], s[:, 2:, :])
    return jnp.maximum(s[:, :Ha - 4, :], r[:, 4:, :])


def _spp_kernel(x_ref, o_ref, buf_ref):
    # x_ref:   (1, Cb, H, W)      input block
    # o_ref:   (1, 4, Cb, H, W)   fused output block (identity, p5, p9, p13)
    # buf_ref: (Cb, H+12, W+12)   VMEM scratch for the -inf padded plane
    x = x_ref[0]                                   # (Cb, H, W)
    _, H, W = x.shape

    # branch 0: identity
    o_ref[0, 0] = x

    # build the -inf padded plane once in VMEM (replaces host-side jnp.pad)
    buf_ref[...] = jnp.full(buf_ref.shape, -jnp.inf, dtype=buf_ref.dtype)
    buf_ref[:, PAD:PAD + H, PAD:PAD + W] = x
    p0 = buf_ref[...]                              # (Cb, H+12, W+12)

    # SPPF cascade (max is associative/idempotent, so this equals 5/9/13 pools)
    p1 = _pool5_valid(p0)                          # (Cb, H+8, W+8)
    o_ref[0, 1] = p1[:, 4:4 + H, 4:4 + W]          # 5x5 'same'

    p2 = _pool5_valid(p1)                          # (Cb, H+4, W+4)
    o_ref[0, 2] = p2[:, 2:2 + H, 2:2 + W]          # 9x9 'same'

    o_ref[0, 3] = _pool5_valid(p2)                 # 13x13 'same'


def _pick_cb(C, H, W, itemsize):
    """Largest channel chunk that fits a conservative VMEM budget.

    Budget ~8 MiB so it fits v5e's 16 MiB default scoped VMEM (and v6e/v7x's
    32 MiB) without touching vmem_limit_bytes.  Capped at C//2 so the grid
    keeps >= 2 steps along the channel axis for v7x's two TensorCores.
    """
    Hp, Wp = H + 2 * PAD, W + 2 * PAD
    budget = 8 * 1024 * 1024
    cap = max(1, C // 2) if C >= 2 else 1
    best = 1
    for cb in range(1, C + 1):
        if C % cb or cb > cap:
            continue
        est = itemsize * cb * (2 * H * W            # double-buffered input
                               + 2 * 4 * H * W      # double-buffered output
                               + 3 * Hp * Wp)       # scratch + live temporaries
        if est <= budget:
            best = cb
    return best


def spp(x):
    """x: (N, C, H, W) float -> (N, 4*C, H, W), channels = [x, p5, p9, p13]."""
    N, C, H, W = x.shape
    Cb = _pick_cb(C, H, W, jnp.dtype(x.dtype).itemsize)
    grid = (N, C // Cb)

    out5 = pl.pallas_call(
        _spp_kernel,
        out_shape=jax.ShapeDtypeStruct((N, 4, C, H, W), x.dtype),
        grid_spec=pltpu.PrefetchScalarGridSpec(
            num_scalar_prefetch=0,
            grid=grid,
            in_specs=[pl.BlockSpec((1, Cb, H, W), lambda n, c: (n, c, 0, 0))],
            out_specs=pl.BlockSpec((1, 4, Cb, H, W),
                                   lambda n, c: (n, 0, c, 0, 0)),
            scratch_shapes=[pltpu.VMEM((Cb, H + 2 * PAD, W + 2 * PAD), x.dtype)],
        ),
        compiler_params=pltpu.CompilerParams(
            dimension_semantics=("parallel", "parallel")),
    )(x)

    # (N, 4, C, H, W) -> (N, 4C, H, W): contiguous row-major reshape (free),
    # identical ordering to torch.cat([x, p5, p9, p13], dim=1).
    return out5.reshape(N, 4 * C, H, W)


def _spp_ref(x):
    """Reference with lax.reduce_window (pads with -inf init value)."""
    def pool(k):
        p = (k - 1) // 2
        return jax.lax.reduce_window(
            x, -jnp.inf, jax.lax.max,
            window_dimensions=(1, 1, k, k),
            window_strides=(1, 1, 1, 1),
            padding=((0, 0), (0, 0), (p, p), (p, p)))
    return jnp.concatenate([x, pool(5), pool(9), pool(13)], axis=1)


if __name__ == "__main__":
    key = jax.random.PRNGKey(0)
    x = jax.random.normal(key, (2, 4, 16, 16), dtype=jnp.float32)

    out = spp(x)
    jax.block_until_ready(out)

    ref = _spp_ref(x)
    assert out.shape == (2, 16, 16, 16), out.shape
    assert jnp.allclose(out, ref), "mismatch vs reference"

    print("KERNEL_OK")
</pallas_src>

<mosaic_0001>
module attributes {stable_mosaic.version = 11 : i64} {
  func.func @_spp_kernel(%arg0: i32, %arg1: i32, %arg2: memref<1x2x16x16xf32, #tpu.memory_space<vmem>>, %arg3: memref<1x4x2x16x16xf32, #tpu.memory_space<vmem>>, %arg4: memref<2x28x28xf32, #tpu.memory_space<vmem>>) attributes {dimension_semantics = [#tpu.dimension_semantics<parallel>, #tpu.dimension_semantics<parallel>], iteration_bounds = array<i64: 2, 2>, scalar_prefetch = 0 : i64, scratch_operands = 1 : i64, tpu.core_type = #tpu.core_type<tc>, window_params = [{transform_indices = @transform_0, window_bounds = array<i64: 1, 2, 16, 16>}, {transform_indices = @transform_1, window_bounds = array<i64: 1, 4, 2, 16, 16>}]} {
    %c0 = arith.constant 0 : index
    %c0_0 = arith.constant 0 : index
    %c0_1 = arith.constant 0 : index
    %c0_2 = arith.constant 0 : index
    %0 = vector.load %arg2[%c0, %c0_0, %c0_1, %c0_2] : memref<1x2x16x16xf32, #tpu.memory_space<vmem>>, vector<1x2x16x16xf32>
    %1 = vector.shape_cast %0 : vector<1x2x16x16xf32> to vector<2x16x16xf32>
    %c0_3 = arith.constant 0 : index
    %c0_4 = arith.constant 0 : index
    %c0_5 = arith.constant 0 : index
    %c0_6 = arith.constant 0 : index
    %c0_7 = arith.constant 0 : index
    %2 = vector.load %arg3[%c0_3, %c0_4, %c0_5, %c0_6, %c0_7] : memref<1x4x2x16x16xf32, #tpu.memory_space<vmem>>, vector<1x1x2x16x16xf32>
    %3 = vector.shape_cast %2 : vector<1x1x2x16x16xf32> to vector<2x16x16xf32>
    %4 = vector.shape_cast %1 : vector<2x16x16xf32> to vector<1x1x2x16x16xf32>
    tpu.vector_store %arg3[%c0_3, %c0_4, %c0_5, %c0_6, %c0_7], %4 {strides = array<i32>} : memref<1x4x2x16x16xf32, #tpu.memory_space<vmem>>, vector<1x1x2x16x16xf32>,
    %cst = arith.constant 0xFF800000 : f32
    %5 = vector.broadcast %cst : f32 to vector<2x28x28xf32>
    %c0_8 = arith.constant 0 : index
    %c0_9 = arith.constant 0 : index
    %c0_10 = arith.constant 0 : index
    %6 = vector.load %arg4[%c0_8, %c0_9, %c0_10] : memref<2x28x28xf32, #tpu.memory_space<vmem>>, vector<2x28x28xf32>
    tpu.vector_store %arg4[%c0_8, %c0_9, %c0_10], %5 {strides = array<i32>} : memref<2x28x28xf32, #tpu.memory_space<vmem>>, vector<2x28x28xf32>,
    %c0_11 = arith.constant 0 : index
    %c6 = arith.constant 6 : index
    %c6_12 = arith.constant 6 : index
    %7 = vector.load %arg4[%c0_11, %c6, %c6_12] : memref<2x28x28xf32, #tpu.memory_space<vmem>>, vector<2x16x16xf32>
    tpu.vector_store %arg4[%c0_11, %c6, %c6_12], %1 {strides = array<i32>} : memref<2x28x28xf32, #tpu.memory_space<vmem>>, vector<2x16x16xf32>,
    %c0_13 = arith.constant 0 : index
    %c0_14 = arith.constant 0 : index
    %c0_15 = arith.constant 0 : index
    %8 = vector.load %arg4[%c0_13, %c0_14, %c0_15] : memref<2x28x28xf32, #tpu.memory_space<vmem>>, vector<2x28x28xf32>
    %9 = vector.extract_strided_slice %8 {offsets = [0, 0, 0], sizes = [2, 28, 27], strides = [1, 1, 1]} : vector<2x28x28xf32> to vector<2x28x27xf32>
    %10 = vector.extract_strided_slice %8 {offsets = [0, 0, 1], sizes = [2, 28, 27], strides = [1, 1, 1]} : vector<2x28x28xf32> to vector<2x28x27xf32>
    %11 = arith.maximumf %9, %10 : vector<2x28x27xf32>
    %12 = vector.extract_strided_slice %11 {offsets = [0, 0, 0], sizes = [2, 28, 25], strides = [1, 1, 1]} : vector<2x28x27xf32> to vector<2x28x25xf32>
    %13 = vector.extract_strided_slice %11 {offsets = [0, 0, 2], sizes = [2, 28, 25], strides = [1, 1, 1]} : vector<2x28x27xf32> to vector<2x28x25xf32>
    %14 = arith.maximumf %12, %13 : vector<2x28x25xf32>
    %15 = vector.extract_strided_slice %14 {offsets = [0, 0, 0], sizes = [2, 28, 24], strides = [1, 1, 1]} : vector<2x28x25xf32> to vector<2x28x24xf32>
    %16 = vector.extract_strided_slice %8 {offsets = [0, 0, 4], sizes = [2, 28, 24], strides = [1, 1, 1]} : vector<2x28x28xf32> to vector<2x28x24xf32>
    %17 = arith.maximumf %15, %16 : vector<2x28x24xf32>
    %18 = vector.extract_strided_slice %17 {offsets = [0, 0, 0], sizes = [2, 27, 24], strides = [1, 1, 1]} : vector<2x28x24xf32> to vector<2x27x24xf32>
    %19 = vector.extract_strided_slice %17 {offsets = [0, 1, 0], sizes = [2, 27, 24], strides = [1, 1, 1]} : vector<2x28x24xf32> to vector<2x27x24xf32>
    %20 = arith.maximumf %18, %19 : vector<2x27x24xf32>
    %21 = vector.extract_strided_slice %20 {offsets = [0, 0, 0], sizes = [2, 25, 24], strides = [1, 1, 1]} : vector<2x27x24xf32> to vector<2x25x24xf32>
    %22 = vector.extract_strided_slice %20 {offsets = [0, 2, 0], sizes = [2, 25, 24], strides = [1, 1, 1]} : vector<2x27x24xf32> to vector<2x25x24xf32>
    %23 = arith.maximumf %21, %22 : vector<2x25x24xf32>
    %24 = vector.extract_strided_slice %23 {offsets = [0, 0, 0], sizes = [2, 24, 24], strides = [1, 1, 1]} : vector<2x25x24xf32> to vector<2x24x24xf32>
    %25 = vector.extract_strided_slice %17 {offsets = [0, 4, 0], sizes = [2, 24, 24], strides = [1, 1, 1]} : vector<2x28x24xf32> to vector<2x24x24xf32>
    %26 = arith.maximumf %24, %25 : vector<2x24x24xf32>
    %27 = vector.extract_strided_slice %26 {offsets = [0, 4, 4], sizes = [2, 16, 16], strides = [1, 1, 1]} : vector<2x24x24xf32> to vector<2x16x16xf32>
    %c0_16 = arith.constant 0 : index
    %c1 = arith.constant 1 : index
    %c0_17 = arith.constant 0 : index
    %c0_18 = arith.constant 0 : index
    %c0_19 = arith.constant 0 : index
    %28 = vector.load %arg3[%c0_16, %c1, %c0_17, %c0_18, %c0_19] : memref<1x4x2x16x16xf32, #tpu.memory_space<vmem>>, vector<1x1x2x16x16xf32>
    %29 = vector.shape_cast %28 : vector<1x1x2x16x16xf32> to vector<2x16x16xf32>
    %30 = vector.shape_cast %27 : vector<2x16x16xf32> to vector<1x1x2x16x16xf32>
    tpu.vector_store %arg3[%c0_16, %c1, %c0_17, %c0_18, %c0_19], %30 {strides = array<i32>} : memref<1x4x2x16x16xf32, #tpu.memory_space<vmem>>, vector<1x1x2x16x16xf32>,
    %31 = vector.extract_strided_slice %26 {offsets = [0, 0, 0], sizes = [2, 24, 23], strides = [1, 1, 1]} : vector<2x24x24xf32> to vector<2x24x23xf32>
    %32 = vector.extract_strided_slice %26 {offsets = [0, 0, 1], sizes = [2, 24, 23], strides = [1, 1, 1]} : vector<2x24x24xf32> to vector<2x24x23xf32>
    %33 = arith.maximumf %31, %32 : vector<2x24x23xf32>
    %34 = vector.extract_strided_slice %33 {offsets = [0, 0, 0], sizes = [2, 24, 21], strides = [1, 1, 1]} : vector<2x24x23xf32> to vector<2x24x21xf32>
    %35 = vector.extract_strided_slice %33 {offsets = [0, 0, 2], sizes = [2, 24, 21], strides = [1, 1, 1]} : vector<2x24x23xf32> to vector<2x24x21xf32>
    %36 = arith.maximumf %34, %35 : vector<2x24x21xf32>
    %37 = vector.extract_strided_slice %36 {offsets = [0, 0, 0], sizes = [2, 24, 20], strides = [1, 1, 1]} : vector<2x24x21xf32> to vector<2x24x20xf32>
    %38 = vector.extract_strided_slice %26 {offsets = [0, 0, 4], sizes = [2, 24, 20], strides = [1, 1, 1]} : vector<2x24x24xf32> to vector<2x24x20xf32>
    %39 = arith.maximumf %37, %38 : vector<2x24x20xf32>
    %40 = vector.extract_strided_slice %39 {offsets = [0, 0, 0], sizes = [2, 23, 20], strides = [1, 1, 1]} : vector<2x24x20xf32> to vector<2x23x20xf32>
    %41 = vector.extract_strided_slice %39 {offsets = [0, 1, 0], sizes = [2, 23, 20], strides = [1, 1, 1]} : vector<2x24x20xf32> to vector<2x23x20xf32>
    %42 = arith.maximumf %40, %41 : vector<2x23x20xf32>
    %43 = vector.extract_strided_slice %42 {offsets = [0, 0, 0], sizes = [2, 21, 20], strides = [1, 1, 1]} : vector<2x23x20xf32> to vector<2x21x20xf32>
    %44 = vector.extract_strided_slice %42 {offsets = [0, 2, 0], sizes = [2, 21, 20], strides = [1, 1, 1]} : vector<2x23x20xf32> to vector<2x21x20xf32>
    %45 = arith.maximumf %43, %44 : vector<2x21x20xf32>
    %46 = vector.extract_strided_slice %45 {offsets = [0, 0, 0], sizes = [2, 20, 20], strides = [1, 1, 1]} : vector<2x21x20xf32> to vector<2x20x20xf32>
    %47 = vector.extract_strided_slice %39 {offsets = [0, 4, 0], sizes = [2, 20, 20], strides = [1, 1, 1]} : vector<2x24x20xf32> to vector<2x20x20xf32>
    %48 = arith.maximumf %46, %47 : vector<2x20x20xf32>
    %49 = vector.extract_strided_slice %48 {offsets = [0, 2, 2], sizes = [2, 16, 16], strides = [1, 1, 1]} : vector<2x20x20xf32> to vector<2x16x16xf32>
    %c0_20 = arith.constant 0 : index
    %c2 = arith.constant 2 : index
    %c0_21 = arith.constant 0 : index
    %c0_22 = arith.constant 0 : index
    %c0_23 = arith.constant 0 : index
    %50 = vector.load %arg3[%c0_20, %c2, %c0_21, %c0_22, %c0_23] : memref<1x4x2x16x16xf32, #tpu.memory_space<vmem>>, vector<1x1x2x16x16xf32>
    %51 = vector.shape_cast %50 : vector<1x1x2x16x16xf32> to vector<2x16x16xf32>
    %52 = vector.shape_cast %49 : vector<2x16x16xf32> to vector<1x1x2x16x16xf32>
    tpu.vector_store %arg3[%c0_20, %c2, %c0_21, %c0_22, %c0_23], %52 {strides = array<i32>} : memref<1x4x2x16x16xf32, #tpu.memory_space<vmem>>, vector<1x1x2x16x16xf32>,
    %53 = vector.extract_strided_slice %48 {offsets = [0, 0, 0], sizes = [2, 20, 19], strides = [1, 1, 1]} : vector<2x20x20xf32> to vector<2x20x19xf32>
    %54 = vector.extract_strided_slice %48 {offsets = [0, 0, 1], sizes = [2, 20, 19], strides = [1, 1, 1]} : vector<2x20x20xf32> to vector<2x20x19xf32>
    %55 = arith.maximumf %53, %54 : vector<2x20x19xf32>
    %56 = vector.extract_strided_slice %55 {offsets = [0, 0, 0], sizes = [2, 20, 17], strides = [1, 1, 1]} : vector<2x20x19xf32> to vector<2x20x17xf32>
    %57 = vector.extract_strided_slice %55 {offsets = [0, 0, 2], sizes = [2, 20, 17], strides = [1, 1, 1]} : vector<2x20x19xf32> to vector<2x20x17xf32>
    %58 = arith.maximumf %56, %57 : vector<2x20x17xf32>
    %59 = vector.extract_strided_slice %58 {offsets = [0, 0, 0], sizes = [2, 20, 16], strides = [1, 1, 1]} : vector<2x20x17xf32> to vector<2x20x16xf32>
    %60 = vector.extract_strided_slice %48 {offsets = [0, 0, 4], sizes = [2, 20, 16], strides = [1, 1, 1]} : vector<2x20x20xf32> to vector<2x20x16xf32>
    %61 = arith.maximumf %59, %60 : vector<2x20x16xf32>
    %62 = vector.extract_strided_slice %61 {offsets = [0, 0, 0], sizes = [2, 19, 16], strides = [1, 1, 1]} : vector<2x20x16xf32> to vector<2x19x16xf32>
    %63 = vector.extract_strided_slice %61 {offsets = [0, 1, 0], sizes = [2, 19, 16], strides = [1, 1, 1]} : vector<2x20x16xf32> to vector<2x19x16xf32>
    %64 = arith.maximumf %62, %63 : vector<2x19x16xf32>
    %65 = vector.extract_strided_slice %64 {offsets = [0, 0, 0], sizes = [2, 17, 16], strides = [1, 1, 1]} : vector<2x19x16xf32> to vector<2x17x16xf32>
    %66 = vector.extract_strided_slice %64 {offsets = [0, 2, 0], sizes = [2, 17, 16], strides = [1, 1, 1]} : vector<2x19x16xf32> to vector<2x17x16xf32>
    %67 = arith.maximumf %65, %66 : vector<2x17x16xf32>
    %68 = vector.extract_strided_slice %67 {offsets = [0, 0, 0], sizes = [2, 16, 16], strides = [1, 1, 1]} : vector<2x17x16xf32> to vector<2x16x16xf32>
    %69 = vector.extract_strided_slice %61 {offsets = [0, 4, 0], sizes = [2, 16, 16], strides = [1, 1, 1]} : vector<2x20x16xf32> to vector<2x16x16xf32>
    %70 = arith.maximumf %68, %69 : vector<2x16x16xf32>
    %c0_24 = arith.constant 0 : index
    %c3 = arith.constant 3 : index
    %c0_25 = arith.constant 0 : index
    %c0_26 = arith.constant 0 : index
    %c0_27 = arith.constant 0 : index
    %71 = vector.load %arg3[%c0_24, %c3, %c0_25, %c0_26, %c0_27] : memref<1x4x2x16x16xf32, #tpu.memory_space<vmem>>, vector<1x1x2x16x16xf32>
    %72 = vector.shape_cast %71 : vector<1x1x2x16x16xf32> to vector<2x16x16xf32>
    %73 = vector.shape_cast %70 : vector<2x16x16xf32> to vector<1x1x2x16x16xf32>
    tpu.vector_store %arg3[%c0_24, %c3, %c0_25, %c0_26, %c0_27], %73 {strides = array<i32>} : memref<1x4x2x16x16xf32, #tpu.memory_space<vmem>>, vector<1x1x2x16x16xf32>,
    return
  }
  func.func @transform_0(%arg0: i32, %arg1: i32) -> (i32, i32, i32, i32) {
    %c0_i32 = arith.constant 0 : i32
    %c0_i32_0 = arith.constant 0 : i32
    %c0_i32_1 = arith.constant 0 : i32
    return %arg0, %arg1, %c0_i32, %c0_i32_0 : i32, i32, i32, i32
  }
  func.func @transform_1(%arg0: i32, %arg1: i32) -> (i32, i32, i32, i32, i32) {
    %c0_i32 = arith.constant 0 : i32
    %c0_i32_0 = arith.constant 0 : i32
    %c0_i32_1 = arith.constant 0 : i32
    %c0_i32_2 = arith.constant 0 : i32
    return %arg0, %c0_i32, %arg1, %c0_i32_0, %c0_i32_1 : i32, i32, i32, i32, i32
  }
}

</mosaic_0001>

<llo_original>
// kernel: tpu_custom_call.1
$region0: #{tpu_custom_call.1}
  #allocation0 [shape = 'u32[]', space=smem, size = 0x4, offset = 0x4, fixed_abs, tag = 'smem constant byte address 0x4 - core index']
  #allocation1 [shape = 'u32[144,128]{1,0:T(1,128)}', space=vmem, size = 0x12000, scoped, tag = 'internal scratch']
  #allocation2 [shape = 'f32[2,28,28]{2,1,0:T(8,128)}', space=vmem, size = 0x8000, scoped, tag = 'scratch operand']
  #allocation7 [shape = 's32[]', space=sflag, size = 0x4, offset = 0, fixed_abs, tag = 'sflag constant byte address 0x0 - dummy sync flag']
  %s0 = inlined_call_operand.hbm [shape: f32[2,4,16,16], index: 0, kind: input, shape index: {}]
  %s1 = inlined_call_operand.hbm [shape: f32[2,4,4,16,16], index: 1, kind: output, shape index: {}]
  %s2 = sld [smem:[#allocation0]]
  $region41: #{tpu_custom_call.1} parent=0
    _
  %s4 = ssub.s32 1, %s2
  %s5 = scalar_select 0, %s4, %s2
  $region1: #{tpu_custom_call.1} parent=0
    #allocation3 [shape = 'u8[32768]{0}', space=vmem, size = 0x8000, scoped, tag = 'input window, operand 0']
    #allocation4 [shape = 's32[2]{0}', space=sflag, size = 0x8, scoped, tag = 'scoped memory for tpu_custom_call.1']
    #allocation5 [shape = 's32[2]{0}', space=sflag, size = 0x8, scoped, tag = 'scoped memory for tpu_custom_call.1']
    #allocation6 [shape = 'u8[131072]{0}', space=vmem, size = 0x20000, scoped, tag = 'output window, operand 0']
    %6 = vsyncpa [#allocation4], 0
    %s7 = scalar_lea.sflag [#allocation4], 1
    %8 = vsyncpa %s7, 0
    %9 = vsyncpa [#allocation5], 0
    %s10 = scalar_lea.sflag [#allocation5], 1
    %11 = vsyncpa %s10, 0
    loop: start=0, step=1, limit=6
    $region2: #{tpu_custom_call.1} parent=1 // loop_pre_header
      _
    $region3: #{tpu_custom_call.1} parent=1 // loop_header
      %s13 = sphi 0, %s17
      %p14 = scmp.ge.s32.totalorder %s13, 6
      %s20 = sphi 0, %s32
      %s21 = sphi 0, %s28
      %s22 = sphi 0, %s20
      %s23 = sphi 0, %s21
      %s24 = sphi 0, %s22
      %s25 = sphi 0, %s23
      %s37 = sphi 0, %s39
      %s40 = sphi 0, %s37
      %s41 = sphi 0, %s40
      %s57 = sphi 0, %s41
      %s65 = sphi 0, %s67
      %s68 = sphi 0, %s65
      %s69 = sphi 0, %s68
      %s85 = sphi 0, %s69
    $region4: #{tpu_custom_call.1} parent=1 // loop_header_branch
      %16 = sbr.rel (%p14) target = $region8
    $region5: #{tpu_custom_call.1} parent=1 // loop_body
      %s18 = ssub.s32 %s13, 1
      %s19 = ssub.s32 %s13, 2
      %s26 = sadd.s32 1, %s21
      %p27 = scmp.ge.s32.totalorder %s26, 2
      %s28 = scalar_select %p27, 0, %s26
      %s29 = sadd.s32 1, %s20
      %s30 = scalar_select %p27, %s29, %s20
      %p31 = scmp.ge.s32.totalorder %s30, 2
      %s32 = scalar_select %p31, 0, %s30
      %s33 = ssub.s32 %s20, %s32
      %s34 = ssub.s32 %s21, %s28
      %s35 = sor.u32 %s33, %s34
      %p36 = scmp.eq.s32.totalorder %s35, 0
      %s38 = sadd.s32 %s37, 1
      %s39 = scalar_select %p36, %s37, %s38
      %p42 = pneg %p36
      %p43 = scmp.eq.s32.totalorder %s13, 3
      %p44 = por %p42, %p43
      %p45 = scmp.ne.s32.totalorder %s37, %s40
      %p46 = scmp.eq.s32.totalorder %s13, 0
      %p47 = por %p45, %p46
      %p48 = scmp.ne.s32.totalorder %s37, %s40
      %p49 = scmp.eq.s32.totalorder %s18, 3
      %p50 = por %p48, %p49
      %p51 = scmp.ne.s32.totalorder %s40, %s41
      %p52 = scmp.eq.s32.totalorder %s18, 0
      %p53 = por %p51, %p52
      %p54 = scmp.ne.s32.totalorder %s40, %s41
      %p55 = scmp.eq.s32.totalorder %s19, 3
      %p56 = por %p54, %p55
      %p58 = scmp.ne.s32.totalorder %s41, %s57
      %p59 = scmp.eq.s32.totalorder %s19, 0
      %p60 = por %p58, %p59
      %s61 = ssub.s32 %s20, %s32
      %s62 = ssub.s32 %s21, %s28
      %s63 = sor.u32 %s61, %s62
      %p64 = scmp.eq.s32.totalorder %s63, 0
      %s66 = sadd.s32 %s65, 1
      %s67 = scalar_select %p64, %s65, %s66
      %p70 = pneg %p64
      %p71 = scmp.eq.s32.totalorder %s13, 3
      %p72 = por %p70, %p71
      %p73 = scmp.ne.s32.totalorder %s65, %s68
      %p74 = scmp.eq.s32.totalorder %s13, 0
      %p75 = por %p73, %p74
      %p76 = scmp.ne.s32.totalorder %s65, %s68
      %p77 = scmp.eq.s32.totalorder %s18, 3
      %p78 = por %p76, %p77
      %p79 = scmp.ne.s32.totalorder %s68, %s69
      %p80 = scmp.eq.s32.totalorder %s18, 0
      %p81 = por %p79, %p80
      %p82 = scmp.ne.s32.totalorder %s68, %s69
      %p83 = scmp.eq.s32.totalorder %s19, 3
      %p84 = por %p82, %p83
      %p86 = scmp.ne.s32.totalorder %s69, %s85
      %p87 = scmp.eq.s32.totalorder %s19, 0
      %p88 = por %p86, %p87
      %p89 = scmp.le.s32.totalorder 1, %s13
      %p90 = scmp.lt.s32.totalorder %s13, 5
      %p91 = pnand %p89, %p90
      %p92 = pneg %p91
      // Predicated region
      $region9: #{tpu_custom_call.1} parent=5 // pred_check
        _
      $region10: #{tpu_custom_call.1} parent=5 // pred_check_branch
        %94 = sbr.rel (%p91) target = $region12
      $region11: #{tpu_custom_call.1} parent=5 // pred_region
        %s95 = ssub.s32 %s13, 1
      $region12: #{tpu_custom_call.1} parent=5 // pred_fallthru
        _
      %p96 = scmp.lt.s32.totalorder %s13, 4
      // Predicated region
      $region13: #{tpu_custom_call.1} parent=5 // pred_check
        %p97 = pneg %p96
      $region14: #{tpu_custom_call.1} parent=5 // pred_check_branch
        %99 = sbr.rel (%p97) target = $region16
      $region15: #{tpu_custom_call.1} parent=5 // pred_region
        // Predicated region
        $region17: #{tpu_custom_call.1} parent=15 // pred_check
          %p100 = pneg %p47
        $region18: #{tpu_custom_call.1} parent=15 // pred_check_branch
          %102 = sbr.rel (%p100) target = $region20
        $region19: #{tpu_custom_call.1} parent=15 // pred_region
          %s103 = sand.u32 %s37, 1
          %s104 = scalar_lea.sflag [#allocation4], %s103
          %s105 = sand.u32 %s37, 1
          %s106 = smul.addr %s105, 32
          %s107 = scalar_lea.vmem [#allocation3], %s106
          %s108 = smul.u32 2, %s21
          %s110 = ssub.s32 512, 512
          %111 = vsyncadd %s104, %s110
          %s112 = smul.addr %s108, 2
          %s113 = smul.addr %s20, 8
          %s114 = sadd.s32 %s112, %s113
          %s115 = smul.addr %s114, 128
          %s116 = scalar_lea.hbm %s0, %s115
          %s117 = sshll.u32 %s107, 4
          %s118 = int_to_ptr.vmem [resolvable:$true] %s117
          %123 = dma.hbm_to_vmem [thread:$0]  %s116, 512, %s118, %s104, 128, 128, 8
        $region20: #{tpu_custom_call.1} parent=15 // pred_fallthru
          _
      $region16: #{tpu_custom_call.1} parent=5 // pred_fallthru
        _
      %p124 = scmp.le.s32.totalorder 1, %s13
      %p125 = scmp.lt.s32.totalorder %s13, 5
      %p126 = pnand %p124, %p125
      %p127 = pneg %p126
      // Predicated region
      $region21: #{tpu_custom_call.1} parent=5 // pred_check
        _
      $region22: #{tpu_custom_call.1} parent=5 // pred_check_branch
        %129 = sbr.rel (%p126) target = $region24
      $region23: #{tpu_custom_call.1} parent=5 // pred_region
        %s130 = ssub.s32 %s13, 1
        %s131 = sand.u32 %s40, 1
        %s132 = scalar_lea.sflag [#allocation4], %s131
        %s133 = sand.u32 %s40, 1
        %s134 = smul.addr %s133, 32
        %s135 = scalar_lea.vmem [#allocation3], %s134
        // Predicated region
        $region25: #{tpu_custom_call.1} parent=23 // pred_check
          %p136 = pneg %p53
        $region26: #{tpu_custom_call.1} parent=23 // pred_check_branch
          %138 = sbr.rel (%p136) target = $region28
        $region27: #{tpu_custom_call.1} parent=23 // pred_region
          %139 = dma.done %s132, 512
        $region28: #{tpu_custom_call.1} parent=23 // pred_fallthru
          _
        %s140 = sand.u32 %s40, 1
        %s141 = scalar_lea.sflag [#allocation4], %s140
        %s142 = sand.u32 %s40, 1
        %s143 = smul.addr %s142, 32
        %s144 = scalar_lea.vmem [#allocation3], %s143
        %p145 = pneg %p53
        %p146 = pneg %p50
        %p147 = pneg %p81
        %p148 = pneg %p78
        %s149 = sand.u32 %s68, 1
        %s150 = scalar_lea.sflag [#allocation5], %s149
        %s151 = sand.u32 %s68, 1
        %s152 = smul.addr %s151, 128
        %s153 = scalar_lea.vmem [#allocation6], %s152
        %s154 = smul.u32 2, %s23
        %s155 = smul.u32 2, %s23
        %v156 = vld [vmem:[%s135] sm:$0xff]
        %v157 = vld [vmem:[%s135 + $0x8] sm:$0xff]
        %v158 = vld [vmem:[%s135 + $0x10] sm:$0xff]
        %v159 = vld [vmem:[%s135 + $0x18] sm:$0xff]
        %vm160 = vcmask 130048
        %161 = vst.msk [vmem:[%s153] sm:$0xff] %vm160, %v156
        %162 = vst.msk [vmem:[%s153 + $0x8] sm:$0xff] %vm160, %v157
        %163 = vst.msk [vmem:[%s153 + $0x10] sm:$0xff] %vm160, %v158
        %164 = vst.msk [vmem:[%s153 + $0x18] sm:$0xff] %vm160, %v159
        %vm165 = vcmask 228352
        %166 = vst.msk [vmem:[#allocation2] sm:$0xff] %vm165, -inf
        %167 = vst.msk [vmem:[#allocation2 + $0x8] sm:$0xff] %vm165, -inf
        %168 = vst.msk [vmem:[#allocation2 + $0x10] sm:$0xff] %vm165, -inf
        %vm169 = vcmask 224256
        %170 = vst.msk [vmem:[#allocation2 + $0x18] sm:$0xf] %vm169, -inf
        %171 = vst.msk [vmem:[#allocation2 + $0x20] sm:$0xff] %vm165, -inf
        %172 = vst.msk [vmem:[#allocation2 + $0x28] sm:$0xff] %vm165, -inf
        %173 = vst.msk [vmem:[#allocation2 + $0x30] sm:$0xff] %vm165, -inf
        %174 = vst.msk [vmem:[#allocation2 + $0x38] sm:$0xf] %vm169, -inf
        %179 = vrot.lane.b32.xlu0 %v156, 6
        %v180 = vpop.permute.xlu0 %179
        %181 = vrot.lane.b32.xlu0 %v157, 6
        %v182 = vpop.permute.xlu0 %181
        %183 = vrot.lane.b32.xlu0 %v158, 6
        %v184 = vpop.permute.xlu0 %183
        %185 = vrot.lane.b32.xlu0 %v159, 6
        %v186 = vpop.permute.xlu0 %185
        %vm191 = vcmask 179248
        %192 = vst.msk [vmem:[#allocation2 + $0x6] sm:$0xff] %vm191, %v180
        %193 = vst.msk [vmem:[#allocation2 + $0xe] sm:$0xff] %vm191, %v182
        %194 = vst.msk [vmem:[#allocation2 + $0x26] sm:$0xff] %vm191, %v184
        %195 = vst.msk [vmem:[#allocation2 + $0x2e] sm:$0xff] %vm191, %v186
        %v196 = vld [vmem:[#allocation2] sm:$0xff]
        %v197 = vld [vmem:[#allocation2 + $0x8] sm:$0xff]
        %v198 = vld [vmem:[#allocation2 + $0x10] sm:$0xff]
        %v199 = vld [vmem:[#allocation2 + $0x18] sm:$0xf]
        %v200 = vld [vmem:[#allocation2 + $0x20] sm:$0xff]
        %v201 = vld [vmem:[#allocation2 + $0x28] sm:$0xff]
        %v202 = vld [vmem:[#allocation2 + $0x30] sm:$0xff]
        %v203 = vld [vmem:[#allocation2 + $0x38] sm:$0xf]
        %212 = vrot.lane.b32.xlu0 %v196, 127
        %v213 = vpop.permute.xlu0 %212
        %214 = vrot.lane.b32.xlu0 %v197, 127
        %v215 = vpop.permute.xlu0 %214
        %216 = vrot.lane.b32.xlu0 %v198, 127
        %v217 = vpop.permute.xlu0 %216
        %218 = vrot.lane.b32.xlu0 %v199, 127
        %v219 = vpop.permute.xlu0 %218
        %220 = vrot.lane.b32.xlu0 %v200, 127
        %v221 = vpop.permute.xlu0 %220
        %222 = vrot.lane.b32.xlu0 %v201, 127
        %v223 = vpop.permute.xlu0 %222
        %224 = vrot.lane.b32.xlu0 %v202, 127
        %v225 = vpop.permute.xlu0 %224
        %226 = vrot.lane.b32.xlu0 %v203, 127
        %v227 = vpop.permute.xlu0 %226
        %v236 = vmax.f32 %v196, %v213
        %v237 = vmax.f32 %v197, %v215
        %v238 = vmax.f32 %v198, %v217
        %v239 = vmax.f32 %v199, %v219
        %v240 = vmax.f32 %v200, %v221
        %v241 = vmax.f32 %v201, %v223
        %v242 = vmax.f32 %v202, %v225
        %v243 = vmax.f32 %v203, %v227
        %252 = vrot.lane.b32.xlu0 %v236, 126
        %v253 = vpop.permute.xlu0 %252
        %254 = vrot.lane.b32.xlu0 %v237, 126
        %v255 = vpop.permute.xlu0 %254
        %256 = vrot.lane.b32.xlu0 %v238, 126
        %v257 = vpop.permute.xlu0 %256
        %258 = vrot.lane.b32.xlu0 %v239, 126
        %v259 = vpop.permute.xlu0 %258
        %260 = vrot.lane.b32.xlu0 %v240, 126
        %v261 = vpop.permute.xlu0 %260
        %262 = vrot.lane.b32.xlu0 %v241, 126
        %v263 = vpop.permute.xlu0 %262
        %264 = vrot.lane.b32.xlu0 %v242, 126
        %v265 = vpop.permute.xlu0 %264
        %266 = vrot.lane.b32.xlu0 %v243, 126
        %v267 = vpop.permute.xlu0 %266
        %v276 = vmax.f32 %v236, %v253
        %v277 = vmax.f32 %v237, %v255
        %v278 = vmax.f32 %v238, %v257
        %v279 = vmax.f32 %v239, %v259
        %v280 = vmax.f32 %v240, %v261
        %v281 = vmax.f32 %v241, %v263
        %v282 = vmax.f32 %v242, %v265
        %v283 = vmax.f32 %v243, %v267
        %284 = vrot.lane.b32.xlu0 %v196, 124
        %v285 = vpop.permute.xlu0 %284
        %286 = vrot.lane.b32.xlu0 %v197, 124
        %v287 = vpop.permute.xlu0 %286
        %288 = vrot.lane.b32.xlu0 %v198, 124
        %v289 = vpop.permute.xlu0 %288
        %290 = vrot.lane.b32.xlu0 %v199, 124
        %v291 = vpop.permute.xlu0 %290
        %292 = vrot.lane.b32.xlu0 %v200, 124
        %v293 = vpop.permute.xlu0 %292
        %294 = vrot.lane.b32.xlu0 %v201, 124
        %v295 = vpop.permute.xlu0 %294
        %296 = vrot.lane.b32.xlu0 %v202, 124
        %v297 = vpop.permute.xlu0 %296
        %298 = vrot.lane.b32.xlu0 %v203, 124
        %v299 = vpop.permute.xlu0 %298
        %v308 = vmax.f32 %v276, %v285
        %v309 = vmax.f32 %v277, %v287
        %v310 = vmax.f32 %v278, %v289
        %v311 = vmax.f32 %v279, %v291
        %v312 = vmax.f32 %v280, %v293
        %v313 = vmax.f32 %v281, %v295
        %v314 = vmax.f32 %v282, %v297
        %v315 = vmax.f32 %v283, %v299
        %vm324 = vcmask 1046528
        %v325 = vrot.slane %v308, 1
        %v326 = vrot.slane %v309, 1
        %v327 = vsel %vm324, %v325, %v326
        %v328 = vrot.slane %v310, 1
        %v329 = vsel %vm324, %v326, %v328
        %v330 = vrot.slane %v311, 1
        %v331 = vsel %vm324, %v328, %v330
        %v332 = vrot.slane %v312, 1
        %v333 = vrot.slane %v313, 1
        %v334 = vsel %vm324, %v332, %v333
        %v335 = vrot.slane %v314, 1
        %v336 = vsel %vm324, %v333, %v335
        %v337 = vrot.slane %v315, 1
        %v338 = vsel %vm324, %v335, %v337
        %v347 = vmax.f32 %v308, %v327
        %v348 = vmax.f32 %v309, %v329
        %v349 = vmax.f32 %v310, %v331
        %v350 = vmax.f32 %v311, %v330
        %v351 = vmax.f32 %v312, %v334
        %v352 = vmax.f32 %v313, %v336
        %v353 = vmax.f32 %v314, %v338
        %v354 = vmax.f32 %v315, %v337
        %vm363 = vcmask 1045504
        %v364 = vrot.slane %v347, 2
        %v365 = vrot.slane %v348, 2
        %v366 = vsel %vm363, %v364, %v365
        %v367 = vrot.slane %v349, 2
        %v368 = vsel %vm363, %v365, %v367
        %v369 = vrot.slane %v350, 2
        %v370 = vsel %vm363, %v367, %v369
        %v371 = vrot.slane %v351, 2
        %v372 = vrot.slane %v352, 2
        %v373 = vsel %vm363, %v371, %v372
        %v374 = vrot.slane %v353, 2
        %v375 = vsel %vm363, %v372, %v374
        %v376 = vrot.slane %v354, 2
        %v377 = vsel %vm363, %v374, %v376
        %v384 = vmax.f32 %v347, %v366
        %v385 = vmax.f32 %v348, %v368
        %v386 = vmax.f32 %v349, %v370
        %v387 = vmax.f32 %v351, %v373
        %v388 = vmax.f32 %v352, %v375
        %v389 = vmax.f32 %v353, %v377
        %vm390 = vcmask 1043456
        %v391 = vrot.slane %v308, 4
        %v392 = vrot.slane %v309, 4
        %v393 = vsel %vm390, %v391, %v392
        %v394 = vrot.slane %v310, 4
        %v395 = vsel %vm390, %v392, %v394
        %v396 = vrot.slane %v311, 4
        %v397 = vsel %vm390, %v394, %v396
        %v398 = vrot.slane %v312, 4
        %v399 = vrot.slane %v313, 4
        %v400 = vsel %vm390, %v398, %v399
        %v401 = vrot.slane %v314, 4
        %v402 = vsel %vm390, %v399, %v401
        %v403 = vrot.slane %v315, 4
        %v404 = vsel %vm390, %v401, %v403
        %v411 = vmax.f32 %v384, %v393
        %v412 = vmax.f32 %v385, %v395
        %v413 = vmax.f32 %v386, %v397
        %v414 = vmax.f32 %v387, %v400
        %v415 = vmax.f32 %v388, %v402
        %v416 = vmax.f32 %v389, %v404
        %423 = vrot.lane.b32.xlu0 %v411, 124
        %v424 = vpop.permute.xlu0 %423
        %425 = vrot.lane.b32.xlu0 %v412, 124
        %v426 = vpop.permute.xlu0 %425
        %427 = vrot.lane.b32.xlu0 %v413, 124
        %v428 = vpop.permute.xlu0 %427
        %429 = vrot.lane.b32.xlu0 %v414, 124
        %v430 = vpop.permute.xlu0 %429
        %431 = vrot.lane.b32.xlu0 %v415, 124
        %v432 = vpop.permute.xlu0 %431
        %433 = vrot.lane.b32.xlu0 %v416, 124
        %v434 = vpop.permute.xlu0 %433
        %s441 = scalar_lea.vmem %s153, 32 [#allocation6]
        %vm442 = vcmask 130052
        %443 = vst.msk [vmem:[%s441 - $0x4] sm:$0xf0] %vm442, %v424
        %444 = vst.msk [vmem:[%s441 + $0x4] sm:$0xff] %vm160, %v426
        %vm445 = vcmask 125952
        %446 = vst.msk [vmem:[%s441 + $0xc] sm:$0xf] %vm445, %v428
        %447 = vst.msk [vmem:[%s441 + $0xc] sm:$0xf0] %vm442, %v430
        %448 = vst.msk [vmem:[%s441 + $0x14] sm:$0xff] %vm160, %v432
        %449 = vst.msk [vmem:[%s441 + $0x1c] sm:$0xf] %vm445, %v434
        %450 = vrot.lane.b32.xlu0 %v411, 127
        %v451 = vpop.permute.xlu0 %450
        %452 = vrot.lane.b32.xlu0 %v412, 127
        %v453 = vpop.permute.xlu0 %452
        %454 = vrot.lane.b32.xlu0 %v413, 127
        %v455 = vpop.permute.xlu0 %454
        %456 = vrot.lane.b32.xlu0 %v414, 127
        %v457 = vpop.permute.xlu0 %456
        %458 = vrot.lane.b32.xlu0 %v415, 127
        %v459 = vpop.permute.xlu0 %458
        %460 = vrot.lane.b32.xlu0 %v416, 127
        %v461 = vpop.permute.xlu0 %460
        %v468 = vmax.f32 %v411, %v451
        %v469 = vmax.f32 %v412, %v453
        %v470 = vmax.f32 %v413, %v455
        %v471 = vmax.f32 %v414, %v457
        %v472 = vmax.f32 %v415, %v459
        %v473 = vmax.f32 %v416, %v461
        %480 = vrot.lane.b32.xlu0 %v468, 126
        %v481 = vpop.permute.xlu0 %480
        %482 = vrot.lane.b32.xlu0 %v469, 126
        %v483 = vpop.permute.xlu0 %482
        %484 = vrot.lane.b32.xlu0 %v470, 126
        %v485 = vpop.permute.xlu0 %484
        %486 = vrot.lane.b32.xlu0 %v471, 126
        %v487 = vpop.permute.xlu0 %486
        %488 = vrot.lane.b32.xlu0 %v472, 126
        %v489 = vpop.permute.xlu0 %488
        %490 = vrot.lane.b32.xlu0 %v473, 126
        %v491 = vpop.permute.xlu0 %490
        %v498 = vmax.f32 %v468, %v481
        %v499 = vmax.f32 %v469, %v483
        %v500 = vmax.f32 %v470, %v485
        %v501 = vmax.f32 %v471, %v487
        %v502 = vmax.f32 %v472, %v489
        %v503 = vmax.f32 %v473, %v491
        %v504 = vmax.f32 %v498, %v424
        %v505 = vmax.f32 %v499, %v426
        %v506 = vmax.f32 %v500, %v428
        %v507 = vmax.f32 %v501, %v430
        %v508 = vmax.f32 %v502, %v432
        %v509 = vmax.f32 %v503, %v434
        %v516 = vrot.slane %v504, 1
        %v517 = vrot.slane %v505, 1
        %v518 = vsel %vm324, %v516, %v517
        %v519 = vrot.slane %v506, 1
        %v520 = vsel %vm324, %v517, %v519
        %v521 = vrot.slane %v507, 1
        %v522 = vrot.slane %v508, 1
        %v523 = vsel %vm324, %v521, %v522
        %v524 = vrot.slane %v509, 1
        %v525 = vsel %vm324, %v522, %v524
        %v532 = vmax.f32 %v504, %v518
        %v533 = vmax.f32 %v505, %v520
        %v534 = vmax.f32 %v506, %v519
        %v535 = vmax.f32 %v507, %v523
        %v536 = vmax.f32 %v508, %v525
        %v537 = vmax.f32 %v509, %v524
        %v544 = vrot.slane %v532, 2
        %v545 = vrot.slane %v533, 2
        %v546 = vsel %vm363, %v544, %v545
        %v547 = vrot.slane %v534, 2
        %v548 = vsel %vm363, %v545, %v547
        %v549 = vrot.slane %v535, 2
        %v550 = vrot.slane %v536, 2
        %v551 = vsel %vm363, %v549, %v550
        %v552 = vrot.slane %v537, 2
        %v553 = vsel %vm363, %v550, %v552
        %v560 = vmax.f32 %v532, %v546
        %v561 = vmax.f32 %v533, %v548
        %v562 = vmax.f32 %v534, %v547
        %v563 = vmax.f32 %v535, %v551
        %v564 = vmax.f32 %v536, %v553
        %v565 = vmax.f32 %v537, %v552
        %v566 = vrot.slane %v504, 4
        %v567 = vrot.slane %v505, 4
        %v568 = vsel %vm390, %v566, %v567
        %v569 = vrot.slane %v506, 4
        %v570 = vsel %vm390, %v567, %v569
        %v571 = vrot.slane %v507, 4
        %v572 = vrot.slane %v508, 4
        %v573 = vsel %vm390, %v571, %v572
        %v574 = vrot.slane %v509, 4
        %v575 = vsel %vm390, %v572, %v574
        %v582 = vmax.f32 %v560, %v568
        %v583 = vmax.f32 %v561, %v570
        %v584 = vmax.f32 %v562, %v569
        %v585 = vmax.f32 %v563, %v573
        %v586 = vmax.f32 %v564, %v575
        %v587 = vmax.f32 %v565, %v574
        %594 = vrot.lane.b32.xlu0 %v582, 126
        %v595 = vpop.permute.xlu0 %594
        %596 = vrot.lane.b32.xlu0 %v583, 126
        %v597 = vpop.permute.xlu0 %596
        %598 = vrot.lane.b32.xlu0 %v584, 126
        %v599 = vpop.permute.xlu0 %598
        %600 = vrot.lane.b32.xlu0 %v585, 126
        %v601 = vpop.permute.xlu0 %600
        %602 = vrot.lane.b32.xlu0 %v586, 126
        %v603 = vpop.permute.xlu0 %602
        %604 = vrot.lane.b32.xlu0 %v587, 126
        %v605 = vpop.permute.xlu0 %604
        %s612 = scalar_lea.vmem %s153, 64 [#allocation6]
        %vm613 = vcmask 130050
        %614 = vst.msk [vmem:[%s612 - $0x2] sm:$0xfc] %vm613, %v595
        %615 = vst.msk [vmem:[%s612 + $0x6] sm:$0xff] %vm160, %v597
        %vm616 = vcmask 123904
        %617 = vst.msk [vmem:[%s612 + $0xe] sm:$0x3] %vm616, %v599
        %618 = vst.msk [vmem:[%s612 + $0xe] sm:$0xfc] %vm613, %v601
        %619 = vst.msk [vmem:[%s612 + $0x16] sm:$0xff] %vm160, %v603
        %620 = vst.msk [vmem:[%s612 + $0x1e] sm:$0x3] %vm616, %v605
        %621 = vrot.lane.b32.xlu0 %v582, 127
        %v622 = vpop.permute.xlu0 %621
        %623 = vrot.lane.b32.xlu0 %v583, 127
        %v624 = vpop.permute.xlu0 %623
        %625 = vrot.lane.b32.xlu0 %v584, 127
        %v626 = vpop.permute.xlu0 %625
        %627 = vrot.lane.b32.xlu0 %v585, 127
        %v628 = vpop.permute.xlu0 %627
        %629 = vrot.lane.b32.xlu0 %v586, 127
        %v630 = vpop.permute.xlu0 %629
        %631 = vrot.lane.b32.xlu0 %v587, 127
        %v632 = vpop.permute.xlu0 %631
        %v639 = vmax.f32 %v582, %v622
        %v640 = vmax.f32 %v583, %v624
        %v641 = vmax.f32 %v584, %v626
        %v642 = vmax.f32 %v585, %v628
        %v643 = vmax.f32 %v586, %v630
        %v644 = vmax.f32 %v587, %v632
        %651 = vrot.lane.b32.xlu0 %v639, 126
        %v652 = vpop.permute.xlu0 %651
        %653 = vrot.lane.b32.xlu0 %v640, 126
        %v654 = vpop.permute.xlu0 %653
        %655 = vrot.lane.b32.xlu0 %v641, 126
        %v656 = vpop.permute.xlu0 %655
        %657 = vrot.lane.b32.xlu0 %v642, 126
        %v658 = vpop.permute.xlu0 %657
        %659 = vrot.lane.b32.xlu0 %v643, 126
        %v660 = vpop.permute.xlu0 %659
        %661 = vrot.lane.b32.xlu0 %v644, 126
        %v662 = vpop.permute.xlu0 %661
        %v669 = vmax.f32 %v639, %v652
        %v670 = vmax.f32 %v640, %v654
        %v671 = vmax.f32 %v641, %v656
        %v672 = vmax.f32 %v642, %v658
        %v673 = vmax.f32 %v643, %v660
        %v674 = vmax.f32 %v644, %v662
        %675 = vrot.lane.b32.xlu0 %v582, 124
        %v676 = vpop.permute.xlu0 %675
        %677 = vrot.lane.b32.xlu0 %v583, 124
        %v678 = vpop.permute.xlu0 %677
        %679 = vrot.lane.b32.xlu0 %v584, 124
        %v680 = vpop.permute.xlu0 %679
        %681 = vrot.lane.b32.xlu0 %v585, 124
        %v682 = vpop.permute.xlu0 %681
        %683 = vrot.lane.b32.xlu0 %v586, 124
        %v684 = vpop.permute.xlu0 %683
        %685 = vrot.lane.b32.xlu0 %v587, 124
        %v686 = vpop.permute.xlu0 %685
        %v693 = vmax.f32 %v669, %v676
        %v694 = vmax.f32 %v670, %v678
        %v695 = vmax.f32 %v671, %v680
        %v696 = vmax.f32 %v672, %v682
        %v697 = vmax.f32 %v673, %v684
        %v698 = vmax.f32 %v674, %v686
        %v705 = vrot.slane %v693, 1
        %v706 = vrot.slane %v694, 1
        %v707 = vsel %vm324, %v705, %v706
        %v708 = vrot.slane %v695, 1
        %v709 = vsel %vm324, %v706, %v708
        %v710 = vrot.slane %v696, 1
        %v711 = vrot.slane %v697, 1
        %v712 = vsel %vm324, %v710, %v711
        %v713 = vrot.slane %v698, 1
        %v714 = vsel %vm324, %v711, %v713
        %v721 = vmax.f32 %v693, %v707
        %v722 = vmax.f32 %v694, %v709
        %v723 = vmax.f32 %v695, %v708
        %v724 = vmax.f32 %v696, %v712
        %v725 = vmax.f32 %v697, %v714
        %v726 = vmax.f32 %v698, %v713
        %v733 = vrot.slane %v721, 2
        %v734 = vrot.slane %v722, 2
        %v735 = vsel %vm363, %v733, %v734
        %v736 = vrot.slane %v723, 2
        %v737 = vsel %vm363, %v734, %v736
        %v738 = vrot.slane %v724, 2
        %v739 = vrot.slane %v725, 2
        %v740 = vsel %vm363, %v738, %v739
        %v741 = vrot.slane %v726, 2
        %v742 = vsel %vm363, %v739, %v741
        %v747 = vmax.f32 %v721, %v735
        %v748 = vmax.f32 %v722, %v737
        %v749 = vmax.f32 %v724, %v740
        %v750 = vmax.f32 %v725, %v742
        %v751 = vrot.slane %v693, 4
        %v752 = vrot.slane %v694, 4
        %v753 = vsel %vm390, %v751, %v752
        %v754 = vrot.slane %v695, 4
        %v755 = vsel %vm390, %v752, %v754
        %v756 = vrot.slane %v696, 4
        %v757 = vrot.slane %v697, 4
        %v758 = vsel %vm390, %v756, %v757
        %v759 = vrot.slane %v698, 4
        %v760 = vsel %vm390, %v757, %v759
        %v765 = vmax.f32 %v747, %v753
        %v766 = vmax.f32 %v748, %v755
        %v767 = vmax.f32 %v749, %v758
        %v768 = vmax.f32 %v750, %v760
        %s769 = scalar_lea.vmem %s153, 96 [#allocation6]
        %770 = vst.msk [vmem:[%s769] sm:$0xff] %vm160, %v765
        %771 = vst.msk [vmem:[%s769 + $0x8] sm:$0xff] %vm160, %v766
        %772 = vst.msk [vmem:[%s769 + $0x10] sm:$0xff] %vm160, %v767
        %773 = vst.msk [vmem:[%s769 + $0x18] sm:$0xff] %vm160, %v768
        %s774 = sand.u32 %s68, 1
        %s775 = scalar_lea.sflag [#allocation5], %s774
        %s776 = sand.u32 %s68, 1
        %s777 = smul.addr %s776, 128
        %s778 = scalar_lea.vmem [#allocation6], %s777
        // Predicated region
        $region29: #{tpu_custom_call.1} parent=23 // pred_check
          %p779 = pneg %p78
        $region30: #{tpu_custom_call.1} parent=23 // pred_check_branch
          %781 = sbr.rel (%p779) target = $region32
        $region31: #{tpu_custom_call.1} parent=23 // pred_region
          #allocation8 [shape = 'u32[6]{0}', space=smem, size = 0x18, scoped, tag = 'DMA stride descriptor']
          %s782 = smul.u32 2, %s23
          %s784 = ssub.s32 2048, 2048
          %785 = vsyncadd %s775, %s784
          %s786 = smul.addr %s782, 2
          %s787 = smul.addr %s22, 32
          %s788 = sadd.s32 %s786, %s787
          %s789 = smul.addr %s788, 128
          %s790 = scalar_lea.hbm %s1, %s789
          %s792 = sshll.u32 1, 14
          %s793 = sxor.u32 4294967295, %s792
          %s796 = sshll.u32 7, 18
          %s797 = sxor.u32 4294967295, %s796
          %s798 = sand.u32 0, %s797
          %s800 = sor.u32 %s798, 0
          %s802 = sshll.u32 3, 24
          %s803 = sxor.u32 4294967295, %s802
          %s804 = sand.u32 %s800, %s803
          %s806 = sor.u32 %s804, 0
          %s807 = sshll.u32 %s778, 4
          %s808 = int_to_ptr.vmem [resolvable:$true] %s807
          %814 = sst [smem:[#allocation8]] 512
          %s815 = scalar_lea.smem [#allocation8], 1
          %816 = sst [smem:[%s815]] 1024
          %s817 = scalar_lea.smem [#allocation8], 2
          %818 = sst [smem:[%s817]] 4
          %s819 = scalar_lea.smem [#allocation8], 3
          %820 = sst [smem:[%s819]] 128
          %s821 = scalar_lea.smem [#allocation8], 4
          %822 = sst [smem:[%s821]] 128
          %s823 = scalar_lea.smem [#allocation8], 5
          %824 = sst [smem:[%s823]] 8
          %826 = dma.general %s808, 2048, %s790, %s775, [#allocation7], [#allocation8], %s806, 0
        $region32: #{tpu_custom_call.1} parent=23 // pred_fallthru
          _
      $region24: #{tpu_custom_call.1} parent=5 // pred_fallthru
        _
      %p827 = scmp.le.s32.totalorder 2, %s13
      // Predicated region
      $region33: #{tpu_custom_call.1} parent=5 // pred_check
        %p828 = pneg %p827
      $region34: #{tpu_custom_call.1} parent=5 // pred_check_branch
        %830 = sbr.rel (%p828) target = $region36
      $region35: #{tpu_custom_call.1} parent=5 // pred_region
        %s831 = ssub.s32 %s13, 2
        // Predicated region
        $region37: #{tpu_custom_call.1} parent=35 // pred_check
          %p832 = pneg %p84
        $region38: #{tpu_custom_call.1} parent=35 // pred_check_branch
          %834 = sbr.rel (%p832) target = $region40
        $region39: #{tpu_custom_call.1} parent=35 // pred_region
          %s835 = sand.u32 %s69, 1
          %s836 = scalar_lea.sflag [#allocation5], %s835
          %s837 = sand.u32 %s69, 1
          %s838 = smul.addr %s837, 128
          %s839 = scalar_lea.vmem [#allocation6], %s838
          %840 = dma.done %s836, 2048
        $region40: #{tpu_custom_call.1} parent=35 // pred_fallthru
          _
      $region36: #{tpu_custom_call.1} parent=5 // pred_fallthru
        _
    $region6: #{tpu_custom_call.1} parent=1 // loop_footer
      %s17 = sadd.s32 1, %s13
    $region7: #{tpu_custom_call.1} parent=1 // loop_footer_branch
      %12 = sbr.rel target = $region3
    $region8: #{tpu_custom_call.1} parent=1 // loop_exit
      _
    %841 = vsyncpa [#allocation4], 1
    %s842 = scalar_lea.sflag [#allocation4], 1
    %843 = vsyncpa %s842, 1
    %844 = vsyncpa [#allocation5], 1
    %s845 = scalar_lea.sflag [#allocation5], 1
    %846 = vsyncpa %s845, 1

</llo_original>
